<compile_context>
chip_gen: v7x
topology: tpu7x:2x2x1
jax: 0.10.0
libtpu: 0.0.40
codegen_flags: <defaults>
</compile_context>

<pallas_src>
import functools

import jax
import jax.numpy as jnp
from jax.experimental import pallas as pl
from jax.experimental.pallas import tpu as pltpu

LN_EPS = 1e-5
D1 = 100      # fc1 / ln1 true width
D2 = 60       # fc2 / fc3 / ln2 true width
HPAD = 128    # padded lane width for both hidden layers


def _round_up(x, m):
    return (x + m - 1) // m * m


# ----------------------------------------------------------------------------
# Reference math (mirrors PyTorch exactly; used only for the correctness check)
# ----------------------------------------------------------------------------
def _layernorm(x, gamma, beta):
    mu = jnp.mean(x, axis=-1, keepdims=True)
    var = jnp.mean((x - mu) ** 2, axis=-1, keepdims=True)   # biased, like PyTorch
    return (x - mu) * jax.lax.rsqrt(var + LN_EPS) * gamma + beta


def reference_forward(state, action, p):
    B = state.shape[0]
    x_s = state.reshape(B, -1)
    h = x_s @ p["w1"] + p["b1"]
    h = _layernorm(h, p["g1"], p["be1"])
    h = jnp.maximum(h, 0.0)
    h = h @ p["w2"] + p["b2"]
    h = _layernorm(h, p["g2"], p["be2"])
    h = jnp.maximum(h, 0.0)
    x_a = action.reshape(B, -1) @ p["w3"] + p["b3"]
    q = jnp.maximum(h + x_a, 0.0)
    return q @ p["wq"] + p["bq"]


# ----------------------------------------------------------------------------
# Kernel
# ----------------------------------------------------------------------------
def _padded_layernorm(x, gamma, beta, n_valid):
    """LayerNorm over a 128-lane-padded tile whose pad lanes are EXACTLY zero.

    Mean / variance use the TRUE feature count; because pad lanes are zero they
    contribute nothing to sum(x) or sum(x*x).  gamma/beta are zero in pad lanes,
    so the output pad lanes stay zero (required by the following matmul / head).
    """
    inv_n = 1.0 / float(n_valid)
    mu = jnp.sum(x, axis=-1, keepdims=True) * inv_n
    var = jnp.sum(x * x, axis=-1, keepdims=True) * inv_n - mu * mu
    var = jnp.maximum(var, 0.0)   # guard E[x^2]-mu^2 against tiny negatives
    return (x - mu) * jax.lax.rsqrt(var + LN_EPS) * gamma + beta


def _critic_kernel(
    s_ref, a_ref,                            # (TILE_B, n_state), (TILE_B, n_action)
    w1_ref, b1_ref, g1_ref, be1_ref,         # (n_state, 128), (1, 128) x3
    w2_ref, b2_ref, g2_ref, be2_ref,         # (128, 128), (1, 128) x3
    w3_ref, b3_ref,                          # (n_action, 128), (1, 128)
    wq_ref, bq_ref,                          # (1, 128), (1, 1)
    q_ref,                                   # (1, TILE_B) out (lane-dense row)
    *, d1, d2,
):
    mx = w1_ref.dtype                        # bf16 (default) or f32 MXU operands

    # ---- fc1(state) and fc3(action): two small MXU passes, f32 accumulate ----
    h1 = jnp.dot(s_ref[...].astype(mx), w1_ref[...],
                 preferred_element_type=jnp.float32) + b1_ref[...]
    ha = jnp.dot(a_ref[...].astype(mx), w3_ref[...],
                 preferred_element_type=jnp.float32) + b3_ref[...]

    # ---- LN1 + ReLU (f32) ----
    h1 = jnp.maximum(_padded_layernorm(h1, g1_ref[...], be1_ref[...], d1), 0.0)

    # ---- fc2 (128x128 MXU tile) + LN2 + ReLU ----
    h2 = jnp.dot(h1.astype(w2_ref.dtype), w2_ref[...],
                 preferred_element_type=jnp.float32) + b2_ref[...]
    h2 = jnp.maximum(_padded_layernorm(h2, g2_ref[...], be2_ref[...], d2), 0.0)

    # ---- combine + N=1 head as VPU multiply + XLU lane reduce (no MXU pass) ----
    q_in = jnp.maximum(h2 + ha, 0.0)
    q_col = jnp.sum(q_in * wq_ref[...], axis=-1, keepdims=True) + bq_ref[...]
    # Lane-dense writeback: (TILE_B, 1) column -> (1, TILE_B) row (XLU has slack).
    q_ref[...] = q_col.reshape(q_ref.shape).astype(q_ref.dtype)


# ----------------------------------------------------------------------------
# Host-side packing + wrapper
# ----------------------------------------------------------------------------
def pack_params(p, matmul_dtype=jnp.bfloat16):
    """Pack PyTorch-shaped params into the padded kernel layout.

    matmul_dtype controls the MXU weight-operand dtype (bf16 is the fast path on
    v5e/v6e/v7x; use jnp.float32 for bit-tight parity).  Biases, LN params and
    the head weights stay f32 (elementwise path).

    Invariant (required by _padded_layernorm): every padded column / lane of
    the weights, biases, gamma and beta below is EXACTLY zero.
    """
    n_state = p["w1"].shape[0]
    n_action = p["w3"].shape[0]

    w1 = jnp.zeros((n_state, HPAD), jnp.float32).at[:, :D1].set(p["w1"])
    b1 = jnp.zeros((1, HPAD), jnp.float32).at[:, :D1].set(p["b1"])
    g1 = jnp.zeros((1, HPAD), jnp.float32).at[:, :D1].set(p["g1"])
    be1 = jnp.zeros((1, HPAD), jnp.float32).at[:, :D1].set(p["be1"])

    w2 = jnp.zeros((HPAD, HPAD), jnp.float32).at[:D1, :D2].set(p["w2"])
    b2 = jnp.zeros((1, HPAD), jnp.float32).at[:, :D2].set(p["b2"])
    g2 = jnp.zeros((1, HPAD), jnp.float32).at[:, :D2].set(p["g2"])
    be2 = jnp.zeros((1, HPAD), jnp.float32).at[:, :D2].set(p["be2"])

    w3 = jnp.zeros((n_action, HPAD), jnp.float32).at[:, :D2].set(p["w3"])
    b3 = jnp.zeros((1, HPAD), jnp.float32).at[:, :D2].set(p["b3"])

    wq = jnp.zeros((1, HPAD), jnp.float32).at[:, :D2].set(p["wq"][:, 0])
    bq = p["bq"].reshape(1, 1).astype(jnp.float32)

    return {
        "w1": w1.astype(matmul_dtype), "b1": b1, "g1": g1, "be1": be1,
        "w2": w2.astype(matmul_dtype), "b2": b2, "g2": g2, "be2": be2,
        "w3": w3.astype(matmul_dtype), "b3": b3,
        "wq": wq, "bq": bq,
    }


def critic_forward(state, action, packed, *, tile_b=1024):
    """Batch-tiled Pallas forward.

    tile_b: multiple of 8 (use multiples of 128 at large B for lane-dense
    output blocks).  Default 1024; ~2-4K is safe on v7x (64 MiB VMEM), keep
    <=1-2K on v5e unless vmem_limit_bytes is raised further.
    """
    B = state.shape[0]
    x_s = state.reshape(B, -1)
    x_a = action.reshape(B, -1)
    n_state = x_s.shape[1]
    n_action = x_a.shape[1]

    # Activations use the same dtype as the MXU weight operands (bf16 default):
    # halves input HBM traffic and the lane-padded input VMEM blocks.
    in_dtype = packed["w1"].dtype
    x_s = x_s.astype(in_dtype)
    x_a = x_a.astype(in_dtype)

    tile_b = _round_up(max(8, min(tile_b, _round_up(B, 8))), 8)
    b_pad = _round_up(B, tile_b)
    if b_pad != B:  # remainder padding only (no full-batch concat pass anymore)
        x_s = jnp.pad(x_s, ((0, b_pad - B), (0, 0)))
        x_a = jnp.pad(x_a, ((0, b_pad - B), (0, 0)))
    num_tiles = b_pad // tile_b

    weights = [packed["w1"], packed["b1"], packed["g1"], packed["be1"],
               packed["w2"], packed["b2"], packed["g2"], packed["be2"],
               packed["w3"], packed["b3"], packed["wq"], packed["bq"]]

    def resident(arr):  # constant index_map -> weight block stays VMEM-resident
        return pl.BlockSpec(arr.shape, lambda i: (0, 0))

    kernel = functools.partial(_critic_kernel, d1=D1, d2=D2)

    # Scoped-VMEM budget sized from the tile (double-buffered I/O + f32 temps),
    # plus headroom for resident weights / compiler scratch.
    in_bytes = jnp.dtype(in_dtype).itemsize
    per_row = (2 * (_round_up(n_state, 128) + _round_up(n_action, 128)) * in_bytes
               + 8 * HPAD * 4      # f32 temporaries (h1, ha, h2, q_in, ...)
               + 2 * 4)            # double-buffered output row
    vmem_limit = int(min(per_row * tile_b + (4 << 20), 48 << 20))

    q_rows = pl.pallas_call(
        kernel,
        out_shape=jax.ShapeDtypeStruct((num_tiles, tile_b), jnp.float32),
        grid_spec=pl.GridSpec(
            grid=(num_tiles,),
            in_specs=[pl.BlockSpec((tile_b, n_state), lambda i: (i, 0)),
                      pl.BlockSpec((tile_b, n_action), lambda i: (i, 0))]
                     + [resident(w) for w in weights],
            # Lane-dense output block (1, tile_b): unmasked vst, tiny out buffer.
            out_specs=pl.BlockSpec((1, tile_b), lambda i: (i, 0)),
        ),
        compiler_params=pltpu.CompilerParams(
            dimension_semantics=("parallel",),
            vmem_limit_bytes=vmem_limit),
    )(x_s, x_a, *weights)

    return q_rows.reshape(b_pad, 1)[:B]


# ----------------------------------------------------------------------------
# Deterministic synthetic init (shapes match the PyTorch module)
# ----------------------------------------------------------------------------
def init_params(key, n_state, n_action):
    ks = jax.random.split(key, 4)

    def lin(k, fan_in, fan_out):
        scale = 1.0 / jnp.sqrt(fan_in)
        kw, kb = jax.random.split(k)
        w = jax.random.uniform(kw, (fan_in, fan_out), jnp.float32, -scale, scale)
        b = jax.random.uniform(kb, (1, fan_out), jnp.float32, -scale, scale)
        return w, b

    w1, b1 = lin(ks[0], n_state, D1)
    w2, b2 = lin(ks[1], D1, D2)
    w3, b3 = lin(ks[2], n_action, D2)
    wq, bq = lin(ks[3], D2, 1)
    return {
        "w1": w1, "b1": b1,
        "g1": jnp.ones((1, D1), jnp.float32), "be1": jnp.zeros((1, D1), jnp.float32),
        "w2": w2, "b2": b2,
        "g2": jnp.ones((1, D2), jnp.float32), "be2": jnp.zeros((1, D2), jnp.float32),
        "w3": w3, "b3": b3,
        "wq": wq, "bq": bq,
    }


if __name__ == "__main__":
    # TODO(synk): optimizer (Adam + weight decay) and checkpoint I/O from the
    # PyTorch module are training-side utilities, not part of the forward pass.
    B, n_state, n_action = 2, 32, 8
    key = jax.random.PRNGKey(0)
    k_s, k_a, k_p, k_s2, k_a2 = jax.random.split(key, 5)

    state = jax.random.normal(k_s, (B, n_state), jnp.float32)
    action = jax.random.normal(k_a, (B, n_action), jnp.float32)
    params = init_params(k_p, n_state, n_action)
    q_expected = reference_forward(state, action, params)

    # Exact f32 path: must match the PyTorch-equivalent reference tightly.
    packed_f32 = pack_params(params, matmul_dtype=jnp.float32)
    q = jax.block_until_ready(critic_forward(state, action, packed_f32))
    assert q.shape == (B, 1)
    assert jnp.allclose(q, q_expected, atol=1e-4, rtol=1e-4), (q, q_expected)

    # bf16 MXU-operand fast path (default): bf16 weights + activations at the
    # dots, f32 accumulate, f32 LN/ReLU/head.
    packed_bf16 = pack_params(params)  # default matmul_dtype=bf16
    q_bf16 = jax.block_until_ready(critic_forward(state, action, packed_bf16))
    assert q_bf16.shape == (B, 1)
    assert jnp.allclose(q_bf16, q_expected, atol=1e-1, rtol=1e-1), (q_bf16, q_expected)

    # Multi-tile + remainder padding + lane-dense (1, TILE_B) output path.
    B2 = 300
    state2 = jax.random.normal(k_s2, (B2, n_state), jnp.float32)
    action2 = jax.random.normal(k_a2, (B2, n_action), jnp.float32)
    q2_expected = reference_forward(state2, action2, params)
    q2 = jax.block_until_ready(critic_forward(state2, action2, packed_f32, tile_b=128))
    assert q2.shape == (B2, 1)
    assert jnp.allclose(q2, q2_expected, atol=1e-4, rtol=1e-4)

    print("KERNEL_OK")
</pallas_src>

<mosaic_0001>
module attributes {stable_mosaic.version = 11 : i64} {
  func.func @_critic_kernel(%arg0: i32, %arg1: memref<8x32xf32, #tpu.memory_space<vmem>>, %arg2: memref<8x8xf32, #tpu.memory_space<vmem>>, %arg3: memref<32x128xf32, #tpu.memory_space<vmem>>, %arg4: memref<1x128xf32, #tpu.memory_space<vmem>>, %arg5: memref<1x128xf32, #tpu.memory_space<vmem>>, %arg6: memref<1x128xf32, #tpu.memory_space<vmem>>, %arg7: memref<128x128xf32, #tpu.memory_space<vmem>>, %arg8: memref<1x128xf32, #tpu.memory_space<vmem>>, %arg9: memref<1x128xf32, #tpu.memory_space<vmem>>, %arg10: memref<1x128xf32, #tpu.memory_space<vmem>>, %arg11: memref<8x128xf32, #tpu.memory_space<vmem>>, %arg12: memref<1x128xf32, #tpu.memory_space<vmem>>, %arg13: memref<1x128xf32, #tpu.memory_space<vmem>>, %arg14: memref<1x1xf32, #tpu.memory_space<vmem>>, %arg15: memref<1x8xf32, #tpu.memory_space<vmem>>) attributes {dimension_semantics = [#tpu.dimension_semantics<parallel>], iteration_bounds = array<i64: 1>, scalar_prefetch = 0 : i64, scratch_operands = 0 : i64, tpu.core_type = #tpu.core_type<tc>, window_params = [{transform_indices = @transform_0, window_bounds = array<i64: 8, 32>}, {transform_indices = @transform_1, window_bounds = array<i64: 8, 8>}, {pipeline_mode = #tpu.pipeline_mode<synchronous>, transform_indices = @transform_2, window_bounds = array<i64: 32, 128>}, {pipeline_mode = #tpu.pipeline_mode<synchronous>, transform_indices = @transform_3, window_bounds = array<i64: 1, 128>}, {pipeline_mode = #tpu.pipeline_mode<synchronous>, transform_indices = @transform_4, window_bounds = array<i64: 1, 128>}, {pipeline_mode = #tpu.pipeline_mode<synchronous>, transform_indices = @transform_5, window_bounds = array<i64: 1, 128>}, {pipeline_mode = #tpu.pipeline_mode<synchronous>, transform_indices = @transform_6, window_bounds = array<i64: 128, 128>}, {pipeline_mode = #tpu.pipeline_mode<synchronous>, transform_indices = @transform_7, window_bounds = array<i64: 1, 128>}, {pipeline_mode = #tpu.pipeline_mode<synchronous>, transform_indices = @transform_8, window_bounds = array<i64: 1, 128>}, {pipeline_mode = #tpu.pipeline_mode<synchronous>, transform_indices = @transform_9, window_bounds = array<i64: 1, 128>}, {pipeline_mode = #tpu.pipeline_mode<synchronous>, transform_indices = @transform_10, window_bounds = array<i64: 8, 128>}, {pipeline_mode = #tpu.pipeline_mode<synchronous>, transform_indices = @transform_11, window_bounds = array<i64: 1, 128>}, {pipeline_mode = #tpu.pipeline_mode<synchronous>, transform_indices = @transform_12, window_bounds = array<i64: 1, 128>}, {pipeline_mode = #tpu.pipeline_mode<synchronous>, transform_indices = @transform_13, window_bounds = array<i64: 1, 1>}, {transform_indices = @transform_14, window_bounds = array<i64: 1, 8>}]} {
    %c0 = arith.constant 0 : index
    %c0_0 = arith.constant 0 : index
    %0 = vector.load %arg1[%c0, %c0_0] : memref<8x32xf32, #tpu.memory_space<vmem>>, vector<8x32xf32>
    %c0_1 = arith.constant 0 : index
    %c0_2 = arith.constant 0 : index
    %1 = vector.load %arg3[%c0_1, %c0_2] : memref<32x128xf32, #tpu.memory_space<vmem>>, vector<32x128xf32>
    %cst = arith.constant dense<0.000000e+00> : vector<8x128xf32>
    %2 = tpu.matmul %0, %1, %cst {dimension_numbers = #tpu.dot_dimension_numbers<[1], [0], [0], [1], [0, 0, 1, 1], [], []>} : vector<8x32xf32>, vector<32x128xf32>, vector<8x128xf32> -> vector<8x128xf32>
    %c0_3 = arith.constant 0 : index
    %c0_4 = arith.constant 0 : index
    %3 = vector.load %arg4[%c0_3, %c0_4] : memref<1x128xf32, #tpu.memory_space<vmem>>, vector<1x128xf32>
    %4 = vector.broadcast %3 : vector<1x128xf32> to vector<8x128xf32>
    %5 = arith.addf %2, %4 : vector<8x128xf32>
    %c0_5 = arith.constant 0 : index
    %c0_6 = arith.constant 0 : index
    %6 = vector.load %arg2[%c0_5, %c0_6] : memref<8x8xf32, #tpu.memory_space<vmem>>, vector<8x8xf32>
    %c0_7 = arith.constant 0 : index
    %c0_8 = arith.constant 0 : index
    %7 = vector.load %arg11[%c0_7, %c0_8] : memref<8x128xf32, #tpu.memory_space<vmem>>, vector<8x128xf32>
    %cst_9 = arith.constant dense<0.000000e+00> : vector<8x128xf32>
    %8 = tpu.matmul %6, %7, %cst_9 {dimension_numbers = #tpu.dot_dimension_numbers<[1], [0], [0], [1], [0, 0, 1, 1], [], []>} : vector<8x8xf32>, vector<8x128xf32>, vector<8x128xf32> -> vector<8x128xf32>
    %c0_10 = arith.constant 0 : index
    %c0_11 = arith.constant 0 : index
    %9 = vector.load %arg12[%c0_10, %c0_11] : memref<1x128xf32, #tpu.memory_space<vmem>>, vector<1x128xf32>
    %10 = vector.broadcast %9 : vector<1x128xf32> to vector<8x128xf32>
    %11 = arith.addf %8, %10 : vector<8x128xf32>
    %c0_12 = arith.constant 0 : index
    %c0_13 = arith.constant 0 : index
    %12 = vector.load %arg5[%c0_12, %c0_13] : memref<1x128xf32, #tpu.memory_space<vmem>>, vector<1x128xf32>
    %c0_14 = arith.constant 0 : index
    %c0_15 = arith.constant 0 : index
    %13 = vector.load %arg6[%c0_14, %c0_15] : memref<1x128xf32, #tpu.memory_space<vmem>>, vector<1x128xf32>
    %cst_16 = arith.constant dense<0.000000e+00> : vector<8xf32>
    %14 = vector.multi_reduction <add>, %5, %cst_16 [1] : vector<8x128xf32> to vector<8xf32>
    %15 = vector.shape_cast %14 : vector<8xf32> to vector<8x1xf32>
    %cst_17 = arith.constant 0.00999999977 : f32
    %16 = vector.broadcast %cst_17 : f32 to vector<8x1xf32>
    %17 = arith.mulf %15, %16 : vector<8x1xf32>
    %18 = arith.mulf %5, %5 : vector<8x128xf32>
    %cst_18 = arith.constant dense<0.000000e+00> : vector<8xf32>
    %19 = vector.multi_reduction <add>, %18, %cst_18 [1] : vector<8x128xf32> to vector<8xf32>
    %20 = vector.shape_cast %19 : vector<8xf32> to vector<8x1xf32>
    %cst_19 = arith.constant 0.00999999977 : f32
    %21 = vector.broadcast %cst_19 : f32 to vector<8x1xf32>
    %22 = arith.mulf %20, %21 : vector<8x1xf32>
    %23 = arith.mulf %17, %17 : vector<8x1xf32>
    %24 = arith.subf %22, %23 : vector<8x1xf32>
    %cst_20 = arith.constant 0.000000e+00 : f32
    %25 = vector.broadcast %cst_20 : f32 to vector<8x1xf32>
    %26 = arith.maximumf %24, %25 : vector<8x1xf32>
    %27 = vector.broadcast %17 : vector<8x1xf32> to vector<8x128xf32>
    %28 = arith.subf %5, %27 : vector<8x128xf32>
    %cst_21 = arith.constant 9.99999974E-6 : f32
    %29 = vector.broadcast %cst_21 : f32 to vector<8x1xf32>
    %30 = arith.addf %26, %29 : vector<8x1xf32>
    %31 = math.rsqrt %30 : vector<8x1xf32>
    %32 = vector.broadcast %31 : vector<8x1xf32> to vector<8x128xf32>
    %33 = arith.mulf %28, %32 : vector<8x128xf32>
    %34 = vector.broadcast %12 : vector<1x128xf32> to vector<8x128xf32>
    %35 = arith.mulf %33, %34 : vector<8x128xf32>
    %36 = vector.broadcast %13 : vector<1x128xf32> to vector<8x128xf32>
    %37 = arith.addf %35, %36 : vector<8x128xf32>
    %cst_22 = arith.constant 0.000000e+00 : f32
    %38 = vector.broadcast %cst_22 : f32 to vector<8x128xf32>
    %39 = arith.maximumf %37, %38 : vector<8x128xf32>
    %c0_23 = arith.constant 0 : index
    %c0_24 = arith.constant 0 : index
    %40 = vector.load %arg7[%c0_23, %c0_24] : memref<128x128xf32, #tpu.memory_space<vmem>>, vector<128x128xf32>
    %cst_25 = arith.constant dense<0.000000e+00> : vector<8x128xf32>
    %41 = tpu.matmul %39, %40, %cst_25 {dimension_numbers = #tpu.dot_dimension_numbers<[1], [0], [0], [1], [0, 0, 1, 1], [], []>} : vector<8x128xf32>, vector<128x128xf32>, vector<8x128xf32> -> vector<8x128xf32>
    %c0_26 = arith.constant 0 : index
    %c0_27 = arith.constant 0 : index
    %42 = vector.load %arg8[%c0_26, %c0_27] : memref<1x128xf32, #tpu.memory_space<vmem>>, vector<1x128xf32>
    %43 = vector.broadcast %42 : vector<1x128xf32> to vector<8x128xf32>
    %44 = arith.addf %41, %43 : vector<8x128xf32>
    %c0_28 = arith.constant 0 : index
    %c0_29 = arith.constant 0 : index
    %45 = vector.load %arg9[%c0_28, %c0_29] : memref<1x128xf32, #tpu.memory_space<vmem>>, vector<1x128xf32>
    %c0_30 = arith.constant 0 : index
    %c0_31 = arith.constant 0 : index
    %46 = vector.load %arg10[%c0_30, %c0_31] : memref<1x128xf32, #tpu.memory_space<vmem>>, vector<1x128xf32>
    %cst_32 = arith.constant dense<0.000000e+00> : vector<8xf32>
    %47 = vector.multi_reduction <add>, %44, %cst_32 [1] : vector<8x128xf32> to vector<8xf32>
    %48 = vector.shape_cast %47 : vector<8xf32> to vector<8x1xf32>
    %cst_33 = arith.constant 0.0166666675 : f32
    %49 = vector.broadcast %cst_33 : f32 to vector<8x1xf32>
    %50 = arith.mulf %48, %49 : vector<8x1xf32>
    %51 = arith.mulf %44, %44 : vector<8x128xf32>
    %cst_34 = arith.constant dense<0.000000e+00> : vector<8xf32>
    %52 = vector.multi_reduction <add>, %51, %cst_34 [1] : vector<8x128xf32> to vector<8xf32>
    %53 = vector.shape_cast %52 : vector<8xf32> to vector<8x1xf32>
    %cst_35 = arith.constant 0.0166666675 : f32
    %54 = vector.broadcast %cst_35 : f32 to vector<8x1xf32>
    %55 = arith.mulf %53, %54 : vector<8x1xf32>
    %56 = arith.mulf %50, %50 : vector<8x1xf32>
    %57 = arith.subf %55, %56 : vector<8x1xf32>
    %cst_36 = arith.constant 0.000000e+00 : f32
    %58 = vector.broadcast %cst_36 : f32 to vector<8x1xf32>
    %59 = arith.maximumf %57, %58 : vector<8x1xf32>
    %60 = vector.broadcast %50 : vector<8x1xf32> to vector<8x128xf32>
    %61 = arith.subf %44, %60 : vector<8x128xf32>
    %cst_37 = arith.constant 9.99999974E-6 : f32
    %62 = vector.broadcast %cst_37 : f32 to vector<8x1xf32>
    %63 = arith.addf %59, %62 : vector<8x1xf32>
    %64 = math.rsqrt %63 : vector<8x1xf32>
    %65 = vector.broadcast %64 : vector<8x1xf32> to vector<8x128xf32>
    %66 = arith.mulf %61, %65 : vector<8x128xf32>
    %67 = vector.broadcast %45 : vector<1x128xf32> to vector<8x128xf32>
    %68 = arith.mulf %66, %67 : vector<8x128xf32>
    %69 = vector.broadcast %46 : vector<1x128xf32> to vector<8x128xf32>
    %70 = arith.addf %68, %69 : vector<8x128xf32>
    %cst_38 = arith.constant 0.000000e+00 : f32
    %71 = vector.broadcast %cst_38 : f32 to vector<8x128xf32>
    %72 = arith.maximumf %70, %71 : vector<8x128xf32>
    %73 = arith.addf %72, %11 : vector<8x128xf32>
    %cst_39 = arith.constant 0.000000e+00 : f32
    %74 = vector.broadcast %cst_39 : f32 to vector<8x128xf32>
    %75 = arith.maximumf %73, %74 : vector<8x128xf32>
    %c0_40 = arith.constant 0 : index
    %c0_41 = arith.constant 0 : index
    %76 = vector.load %arg13[%c0_40, %c0_41] : memref<1x128xf32, #tpu.memory_space<vmem>>, vector<1x128xf32>
    %77 = vector.broadcast %76 : vector<1x128xf32> to vector<8x128xf32>
    %78 = arith.mulf %75, %77 : vector<8x128xf32>
    %cst_42 = arith.constant dense<0.000000e+00> : vector<8xf32>
    %79 = vector.multi_reduction <add>, %78, %cst_42 [1] : vector<8x128xf32> to vector<8xf32>
    %80 = vector.shape_cast %79 : vector<8xf32> to vector<8x1xf32>
    %c0_43 = arith.constant 0 : index
    %c0_44 = arith.constant 0 : index
    %81 = vector.load %arg14[%c0_43, %c0_44] : memref<1x1xf32, #tpu.memory_space<vmem>>, vector<1x1xf32>
    %82 = vector.broadcast %81 : vector<1x1xf32> to vector<8x1xf32>
    %83 = arith.addf %80, %82 : vector<8x1xf32>
    %84 = vector.shape_cast %83 : vector<8x1xf32> to vector<1x8xf32>
    %c0_45 = arith.constant 0 : index
    %c0_46 = arith.constant 0 : index
    %85 = vector.load %arg15[%c0_45, %c0_46] : memref<1x8xf32, #tpu.memory_space<vmem>>, vector<1x8xf32>
    tpu.vector_store %arg15[%c0_45, %c0_46], %84 {strides = array<i32>} : memref<1x8xf32, #tpu.memory_space<vmem>>, vector<1x8xf32>,
    return
  }
  func.func @transform_0(%arg0: i32) -> (i32, i32) {
    %c0_i32 = arith.constant 0 : i32
    %c0_i32_0 = arith.constant 0 : i32
    return %arg0, %c0_i32 : i32, i32
  }
  func.func @transform_1(%arg0: i32) -> (i32, i32) {
    %c0_i32 = arith.constant 0 : i32
    %c0_i32_0 = arith.constant 0 : i32
    return %arg0, %c0_i32 : i32, i32
  }
  func.func @transform_2(%arg0: i32) -> (i32, i32) {
    %c0_i32 = arith.constant 0 : i32
    %c0_i32_0 = arith.constant 0 : i32
    %c0_i32_1 = arith.constant 0 : i32
    return %c0_i32, %c0_i32_0 : i32, i32
  }
  func.func @transform_3(%arg0: i32) -> (i32, i32) {
    %c0_i32 = arith.constant 0 : i32
    %c0_i32_0 = arith.constant 0 : i32
    %c0_i32_1 = arith.constant 0 : i32
    return %c0_i32, %c0_i32_0 : i32, i32
  }
  func.func @transform_4(%arg0: i32) -> (i32, i32) {
    %c0_i32 = arith.constant 0 : i32
    %c0_i32_0 = arith.constant 0 : i32
    %c0_i32_1 = arith.constant 0 : i32
    return %c0_i32, %c0_i32_0 : i32, i32
  }
  func.func @transform_5(%arg0: i32) -> (i32, i32) {
    %c0_i32 = arith.constant 0 : i32
    %c0_i32_0 = arith.constant 0 : i32
    %c0_i32_1 = arith.constant 0 : i32
    return %c0_i32, %c0_i32_0 : i32, i32
  }
  func.func @transform_6(%arg0: i32) -> (i32, i32) {
    %c0_i32 = arith.constant 0 : i32
    %c0_i32_0 = arith.constant 0 : i32
    %c0_i32_1 = arith.constant 0 : i32
    return %c0_i32, %c0_i32_0 : i32, i32
  }
  func.func @transform_7(%arg0: i32) -> (i32, i32) {
    %c0_i32 = arith.constant 0 : i32
    %c0_i32_0 = arith.constant 0 : i32
    %c0_i32_1 = arith.constant 0 : i32
    return %c0_i32, %c0_i32_0 : i32, i32
  }
  func.func @transform_8(%arg0: i32) -> (i32, i32) {
    %c0_i32 = arith.constant 0 : i32
    %c0_i32_0 = arith.constant 0 : i32
    %c0_i32_1 = arith.constant 0 : i32
    return %c0_i32, %c0_i32_0 : i32, i32
  }
  func.func @transform_9(%arg0: i32) -> (i32, i32) {
    %c0_i32 = arith.constant 0 : i32
    %c0_i32_0 = arith.constant 0 : i32
    %c0_i32_1 = arith.constant 0 : i32
    return %c0_i32, %c0_i32_0 : i32, i32
  }
  func.func @transform_10(%arg0: i32) -> (i32, i32) {
    %c0_i32 = arith.constant 0 : i32
    %c0_i32_0 = arith.constant 0 : i32
    %c0_i32_1 = arith.constant 0 : i32
    return %c0_i32, %c0_i32_0 : i32, i32
  }
  func.func @transform_11(%arg0: i32) -> (i32, i32) {
    %c0_i32 = arith.constant 0 : i32
    %c0_i32_0 = arith.constant 0 : i32
    %c0_i32_1 = arith.constant 0 : i32
    return %c0_i32, %c0_i32_0 : i32, i32
  }
  func.func @transform_12(%arg0: i32) -> (i32, i32) {
    %c0_i32 = arith.constant 0 : i32
    %c0_i32_0 = arith.constant 0 : i32
    %c0_i32_1 = arith.constant 0 : i32
    return %c0_i32, %c0_i32_0 : i32, i32
  }
  func.func @transform_13(%arg0: i32) -> (i32, i32) {
    %c0_i32 = arith.constant 0 : i32
    %c0_i32_0 = arith.constant 0 : i32
    %c0_i32_1 = arith.constant 0 : i32
    return %c0_i32, %c0_i32_0 : i32, i32
  }
  func.func @transform_14(%arg0: i32) -> (i32, i32) {
    %c0_i32 = arith.constant 0 : i32
    %c0_i32_0 = arith.constant 0 : i32
    return %arg0, %c0_i32 : i32, i32
  }
}

</mosaic_0001>

<llo_original>
// kernel: tpu_custom_call.1
$region0: #{tpu_custom_call.1}
  #allocation0 [shape = 'u32[]', space=smem, size = 0x4, offset = 0x4, fixed_abs, tag = 'smem constant byte address 0x4 - core index']
  #allocation1 [shape = 'u32[144,128]{1,0:T(1,128)}', space=vmem, size = 0x12000, scoped, tag = 'internal scratch']
  #allocation2 [shape = 'f32[1,1]{1,0:T(1,128)S(1)}', space=vmem, size = 0x200, scoped, tag = 'scoped memory for tpu_custom_call.1']
  %s0 = inlined_call_operand.hbm [shape: f32[8,32], index: 0, kind: input, shape index: {}]
  %s1 = inlined_call_operand.hbm [shape: f32[8,8], index: 1, kind: input, shape index: {}]
  %s2 = inlined_call_operand.hbm [shape: f32[32,128], index: 2, kind: input, shape index: {}]
  %s3 = inlined_call_operand.vmem [shape: f32[1,128], index: 3, kind: input, shape index: {}]
  %s4 = inlined_call_operand.vmem [shape: f32[1,128], index: 4, kind: input, shape index: {}]
  %s5 = inlined_call_operand.vmem [shape: f32[1,128], index: 5, kind: input, shape index: {}]
  %s6 = inlined_call_operand.hbm [shape: f32[128,128], index: 6, kind: input, shape index: {}]
  %s7 = inlined_call_operand.vmem [shape: f32[1,128], index: 7, kind: input, shape index: {}]
  %s8 = inlined_call_operand.vmem [shape: f32[1,128], index: 8, kind: input, shape index: {}]
  %s9 = inlined_call_operand.vmem [shape: f32[1,128], index: 9, kind: input, shape index: {}]
  %s10 = inlined_call_operand.vmem [shape: f32[8,128], index: 10, kind: input, shape index: {}]
  %s11 = inlined_call_operand.vmem [shape: f32[1,128], index: 11, kind: input, shape index: {}]
  %s12 = inlined_call_operand.vmem [shape: f32[1,128], index: 12, kind: input, shape index: {}]
  %s13 = inlined_call_operand.<no memory space> [shape: f32[1,1], index: 13, kind: input, shape index: {}]
  %s14 = inlined_call_operand.hbm [shape: f32[1,8], index: 14, kind: output, shape index: {}]
  %s15 = sld [smem:[#allocation0]]
  $region82: #{tpu_custom_call.1} parent=0
    _
  %s17 = ssub.s32 1, %s15
  %s18 = scalar_select 0, %s17, %s15
  %v19 = vstv %s13
  %20 = vst [vmem:[#allocation2] sm:$0x1] %v19
  $region1: #{tpu_custom_call.1} parent=0
    #allocation3 [shape = 'u8[4096]{0}', space=vmem, size = 0x1000, scoped, tag = 'input window, operand 0, single buffered']
    #allocation4 [shape = 's32[1]{0}', space=sflag, size = 0x4, scoped, tag = 'scoped memory for tpu_custom_call.1']
    #allocation5 [shape = 's32[1]{0}', space=sflag, size = 0x4, scoped, tag = 'scoped memory for tpu_custom_call.1']
    #allocation6 [shape = 'u8[4096]{0}', space=vmem, size = 0x1000, scoped, tag = 'input window, operand 1, single buffered']
    #allocation7 [shape = 's32[1]{0}', space=sflag, size = 0x4, scoped, tag = 'scoped memory for tpu_custom_call.1']
    #allocation8 [shape = 'u8[16384]{0}', space=vmem, size = 0x4000, scoped, tag = 'input window, operand 2, single buffered']
    #allocation9 [shape = 'u8[65536]{0}', space=vmem, size = 0x10000, scoped, tag = 'input window, operand 6, single buffered']
    #allocation10 [shape = 's32[1]{0}', space=sflag, size = 0x4, scoped, tag = 'scoped memory for tpu_custom_call.1']
    #allocation11 [shape = 'u8[512]{0}', space=vmem, size = 0x400, scoped, tag = 'output window, operand 0, single buffered']
    %21 = vsyncpa [#allocation4], 0
    %22 = vsyncpa [#allocation7], 0
    %23 = vsyncpa [#allocation10], 0
    %24 = vsyncpa [#allocation5], 0
    // Predicated region
    $region2: #{tpu_custom_call.1} parent=1 // pred_check
      _
    $region3: #{tpu_custom_call.1} parent=1 // pred_check_branch
      %26 = sbr.rel (0) target = $region5
    $region4: #{tpu_custom_call.1} parent=1 // pred_region
      %s28 = ssub.s32 128, 128
      %29 = vsyncadd [#allocation4], %s28
      %s31 = sshll.u32 [#allocation3], 4
      %s32 = int_to_ptr.vmem [resolvable:$true] %s31
      %34 = dma.hbm_to_vmem [thread:$0]  %s0, 128, %s32, [#allocation4]
    $region5: #{tpu_custom_call.1} parent=1 // pred_fallthru
      _
    // Predicated region
    $region6: #{tpu_custom_call.1} parent=1 // pred_check
      _
    $region7: #{tpu_custom_call.1} parent=1 // pred_check_branch
      %36 = sbr.rel (0) target = $region9
    $region8: #{tpu_custom_call.1} parent=1 // pred_region
      %s38 = ssub.s32 128, 128
      %39 = vsyncadd [#allocation7], %s38
      %s41 = sshll.u32 [#allocation6], 4
      %s42 = int_to_ptr.vmem [resolvable:$true] %s41
      %44 = dma.hbm_to_vmem [thread:$0]  %s1, 128, %s42, [#allocation7]
    $region9: #{tpu_custom_call.1} parent=1 // pred_fallthru
      _
    // Predicated region
    $region10: #{tpu_custom_call.1} parent=1 // pred_check
      _
    $region11: #{tpu_custom_call.1} parent=1 // pred_check_branch
      %46 = sbr.rel (0) target = $region13
    $region12: #{tpu_custom_call.1} parent=1 // pred_region
      %s48 = ssub.s32 512, 512
      %49 = vsyncadd [#allocation7], %s48
      %s50 = sshll.u32 [#allocation8], 4
      %s51 = int_to_ptr.vmem [resolvable:$true] %s50
      %56 = dma.hbm_to_vmem [thread:$0]  %s2, 512, %s51, [#allocation7], 128, 128, 8
    $region13: #{tpu_custom_call.1} parent=1 // pred_fallthru
      _
    // Predicated region
    $region14: #{tpu_custom_call.1} parent=1 // pred_check
      _
    $region15: #{tpu_custom_call.1} parent=1 // pred_check_branch
      %58 = sbr.rel (0) target = $region17
    $region16: #{tpu_custom_call.1} parent=1 // pred_region
      _
    $region17: #{tpu_custom_call.1} parent=1 // pred_fallthru
      _
    // Predicated region
    $region18: #{tpu_custom_call.1} parent=1 // pred_check
      _
    $region19: #{tpu_custom_call.1} parent=1 // pred_check_branch
      %60 = sbr.rel (0) target = $region21
    $region20: #{tpu_custom_call.1} parent=1 // pred_region
      _
    $region21: #{tpu_custom_call.1} parent=1 // pred_fallthru
      _
    // Predicated region
    $region22: #{tpu_custom_call.1} parent=1 // pred_check
      _
    $region23: #{tpu_custom_call.1} parent=1 // pred_check_branch
      %62 = sbr.rel (0) target = $region25
    $region24: #{tpu_custom_call.1} parent=1 // pred_region
      _
    $region25: #{tpu_custom_call.1} parent=1 // pred_fallthru
      _
    // Predicated region
    $region26: #{tpu_custom_call.1} parent=1 // pred_check
      _
    $region27: #{tpu_custom_call.1} parent=1 // pred_check_branch
      %64 = sbr.rel (0) target = $region29
    $region28: #{tpu_custom_call.1} parent=1 // pred_region
      %s66 = ssub.s32 2048, 2048
      %67 = vsyncadd [#allocation10], %s66
      %s68 = sshll.u32 [#allocation9], 4
      %s69 = int_to_ptr.vmem [resolvable:$true] %s68
      %74 = dma.hbm_to_vmem [thread:$0]  %s6, 2048, %s69, [#allocation10], 128, 128, 8
    $region29: #{tpu_custom_call.1} parent=1 // pred_fallthru
      _
    // Predicated region
    $region30: #{tpu_custom_call.1} parent=1 // pred_check
      _
    $region31: #{tpu_custom_call.1} parent=1 // pred_check_branch
      %76 = sbr.rel (0) target = $region33
    $region32: #{tpu_custom_call.1} parent=1 // pred_region
      _
    $region33: #{tpu_custom_call.1} parent=1 // pred_fallthru
      _
    // Predicated region
    $region34: #{tpu_custom_call.1} parent=1 // pred_check
      _
    $region35: #{tpu_custom_call.1} parent=1 // pred_check_branch
      %78 = sbr.rel (0) target = $region37
    $region36: #{tpu_custom_call.1} parent=1 // pred_region
      _
    $region37: #{tpu_custom_call.1} parent=1 // pred_fallthru
      _
    // Predicated region
    $region38: #{tpu_custom_call.1} parent=1 // pred_check
      _
    $region39: #{tpu_custom_call.1} parent=1 // pred_check_branch
      %80 = sbr.rel (0) target = $region41
    $region40: #{tpu_custom_call.1} parent=1 // pred_region
      _
    $region41: #{tpu_custom_call.1} parent=1 // pred_fallthru
      _
    // Predicated region
    $region42: #{tpu_custom_call.1} parent=1 // pred_check
      _
    $region43: #{tpu_custom_call.1} parent=1 // pred_check_branch
      %82 = sbr.rel (0) target = $region45
    $region44: #{tpu_custom_call.1} parent=1 // pred_region
      _
    $region45: #{tpu_custom_call.1} parent=1 // pred_fallthru
      _
    // Predicated region
    $region46: #{tpu_custom_call.1} parent=1 // pred_check
      _
    $region47: #{tpu_custom_call.1} parent=1 // pred_check_branch
      %84 = sbr.rel (0) target = $region49
    $region48: #{tpu_custom_call.1} parent=1 // pred_region
      _
    $region49: #{tpu_custom_call.1} parent=1 // pred_fallthru
      _
    // Predicated region
    $region50: #{tpu_custom_call.1} parent=1 // pred_check
      _
    $region51: #{tpu_custom_call.1} parent=1 // pred_check_branch
      %86 = sbr.rel (0) target = $region53
    $region52: #{tpu_custom_call.1} parent=1 // pred_region
      _
    $region53: #{tpu_custom_call.1} parent=1 // pred_fallthru
      _
    // Predicated region
    $region54: #{tpu_custom_call.1} parent=1 // pred_check
      _
    $region55: #{tpu_custom_call.1} parent=1 // pred_check_branch
      %88 = sbr.rel (0) target = $region57
    $region56: #{tpu_custom_call.1} parent=1 // pred_region
      _
    $region57: #{tpu_custom_call.1} parent=1 // pred_fallthru
      _
    // Predicated region
    $region58: #{tpu_custom_call.1} parent=1 // pred_check
      _
    $region59: #{tpu_custom_call.1} parent=1 // pred_check_branch
      %90 = sbr.rel (0) target = $region61
    $region60: #{tpu_custom_call.1} parent=1 // pred_region
      %91 = dma.done [#allocation4], 128
    $region61: #{tpu_custom_call.1} parent=1 // pred_fallthru
      _
    // Predicated region
    $region62: #{tpu_custom_call.1} parent=1 // pred_check
      _
    $region63: #{tpu_custom_call.1} parent=1 // pred_check_branch
      %93 = sbr.rel (0) target = $region65
    $region64: #{tpu_custom_call.1} parent=1 // pred_region
      %94 = dma.done [#allocation7], 128
    $region65: #{tpu_custom_call.1} parent=1 // pred_fallthru
      _
    // Predicated region
    $region66: #{tpu_custom_call.1} parent=1 // pred_check
      _
    $region67: #{tpu_custom_call.1} parent=1 // pred_check_branch
      %96 = sbr.rel (0) target = $region69
    $region68: #{tpu_custom_call.1} parent=1 // pred_region
      %97 = dma.done [#allocation7], 512
    $region69: #{tpu_custom_call.1} parent=1 // pred_fallthru
      _
    // Predicated region
    $region70: #{tpu_custom_call.1} parent=1 // pred_check
      _
    $region71: #{tpu_custom_call.1} parent=1 // pred_check_branch
      %99 = sbr.rel (0) target = $region73
    $region72: #{tpu_custom_call.1} parent=1 // pred_region
      %100 = dma.done [#allocation10], 2048
    $region73: #{tpu_custom_call.1} parent=1 // pred_fallthru
      _
    %v101 = vld [vmem:[#allocation3] sm:$0xff]
    %v102 = vld [vmem:[#allocation8] sm:$0xff]
    %v103 = vld [vmem:[#allocation8 + $0x8] sm:$0xff]
    %v104 = vld [vmem:[#allocation8 + $0x10] sm:$0xff]
    %v105 = vld [vmem:[#allocation8 + $0x18] sm:$0xff]
    %v106 = vld [vmem:[%s3] sm:$0x1]
    %v108 = vlaneseq
    %v109 = vshrl.u32 %v108, 7
    %v110 = vsub.s32 0, %v109
    %v111 = vrot.slane %v106, %v110
    %vm113 = vcmask 261120
    %v115 = vsel %vm113, %v101, 0
    %117 = vmatprep.subr.mxu0 0.0
    %118 = vmatpush1.msra.mxu0 %v102
    %119 = vmatprep.subr.mxu0 0.0
    %120 = vmatpush1.msra.mxu0 %v103
    %121 = vmatprep.subr.mxu0 0.0
    %122 = vmatpush1.msra.mxu0 %v104
    %123 = vmatprep.subr.mxu0 0.0
    %124 = vmatpush1.msra.mxu0 %v105
    %125 = vmatprep.subr.mxu0 0.0
    %126 = vmatpush1.msra.mxu0 0.0
    %127 = vmatprep.subr.mxu0 0.0
    %128 = vmatpush1.msra.mxu0 0.0
    %129 = vmatprep.subr.mxu0 0.0
    %130 = vmatpush1.msra.mxu0 0.0
    %131 = vmatprep.subr.mxu0 0.0
    %132 = vmatpush1.msra.mxu0 0.0
    %133 = vmatprep.subr.mxu0 0.0
    %134 = vmatpush1.msra.mxu0 0.0
    %135 = vmatprep.subr.mxu0 0.0
    %136 = vmatpush1.msra.mxu0 0.0
    %137 = vmatprep.subr.mxu0 0.0
    %138 = vmatpush1.msra.mxu0 0.0
    %139 = vmatprep.subr.mxu0 0.0
    %140 = vmatpush1.msra.mxu0 0.0
    %141 = vmatprep.subr.mxu0 0.0
    %142 = vmatpush1.msra.mxu0 0.0
    %143 = vmatprep.subr.mxu0 0.0
    %144 = vmatpush1.msra.mxu0 0.0
    %145 = vmatprep.subr.mxu0 0.0
    %146 = vmatpush1.msra.mxu0 0.0
    %147 = vmatprep.subr.mxu0 0.0
    %148 = vmatpush1.msra.mxu0 0.0
    %149 = vmatprep.subr.mxu0 0.0
    %150 = vmatpush1.msra.mxu0 0.0
    %151 = vmatprep.subr.mxu0 0.0
    %152 = vmatpush1.msra.mxu0 0.0
    %153 = vmatprep.subr.mxu0 0.0
    %154 = vmatpush1.msra.mxu0 0.0
    %155 = vmatprep.subr.mxu0 0.0
    %156 = vmatpush1.msra.mxu0 0.0
    %157 = vmatprep.subr.mxu0 0.0
    %158 = vmatpush1.msra.mxu0 0.0
    %159 = vmatprep.subr.mxu0 0.0
    %160 = vmatpush1.msra.mxu0 0.0
    %161 = vmatprep.subr.mxu0 0.0
    %162 = vmatpush1.msra.mxu0 0.0
    %163 = vmatprep.subr.mxu0 0.0
    %164 = vmatpush1.msra.mxu0 0.0
    %165 = vmatprep.subr.mxu0 0.0
    %166 = vmatpush1.msra.mxu0 0.0
    %167 = vmatprep.subr.mxu0 0.0
    %168 = vmatpush1.msra.mxu0 0.0
    %169 = vmatprep.subr.mxu0 0.0
    %170 = vmatpush1.msra.mxu0 0.0
    %171 = vmatprep.subr.mxu0 0.0
    %172 = vmatpush1.msra.mxu0 0.0
    %173 = vmatprep.subr.mxu0 0.0
    %174 = vmatpush1.msra.mxu0 0.0
    %175 = vmatprep.subr.mxu0 0.0
    %176 = vmatpush1.msra.mxu0 0.0
    %177 = vmatprep.subr.mxu0 0.0
    %178 = vmatpush1.msra.mxu0 0.0
    %179 = vmatprep.subr.mxu0 0.0
    %180 = vmatpush1.msra.mxu0 0.0
    %181 = vmatprep.mubr.f32.mxu0 0.0
    %182 = vmatmul.mubr.f32.gmra.mrb[0].mxu0 %v115
    %v183 = vpop.f32.mrb[0].mxu0
    %v184 = vadd.f32 %v111, %v183
    %v185 = vpop.f32.mrb[0].mxu0
    %186 = vdwg.mxu0
    %v187 = vld [vmem:[#allocation6] sm:$0xff]
    %v188 = vld [vmem:[%s10] sm:$0xff]
    %v189 = vld [vmem:[%s11] sm:$0x1]
    %v191 = vlaneseq
    %v192 = vshrl.u32 %v191, 7
    %v193 = vsub.s32 0, %v192
    %v194 = vrot.slane %v189, %v193
    %vm196 = vcmask 64512
    %v198 = vsel %vm196, %v187, 0
    %200 = vmatprep.subr.mxu0 0.0
    %201 = vmatpush1.msra.mxu0 %v188
    %202 = vmatprep.subr.mxu0 0.0
    %203 = vmatpush1.msra.mxu0 0.0
    %204 = vmatprep.subr.mxu0 0.0
    %205 = vmatpush1.msra.mxu0 0.0
    %206 = vmatprep.subr.mxu0 0.0
    %207 = vmatpush1.msra.mxu0 0.0
    %208 = vmatprep.subr.mxu0 0.0
    %209 = vmatpush1.msra.mxu0 0.0
    %210 = vmatprep.subr.mxu0 0.0
    %211 = vmatpush1.msra.mxu0 0.0
    %212 = vmatprep.subr.mxu0 0.0
    %213 = vmatpush1.msra.mxu0 0.0
    %214 = vmatprep.subr.mxu0 0.0
    %215 = vmatpush1.msra.mxu0 0.0
    %216 = vmatprep.subr.mxu0 0.0
    %217 = vmatpush1.msra.mxu0 0.0
    %218 = vmatprep.subr.mxu0 0.0
    %219 = vmatpush1.msra.mxu0 0.0
    %220 = vmatprep.subr.mxu0 0.0
    %221 = vmatpush1.msra.mxu0 0.0
    %222 = vmatprep.subr.mxu0 0.0
    %223 = vmatpush1.msra.mxu0 0.0
    %224 = vmatprep.subr.mxu0 0.0
    %225 = vmatpush1.msra.mxu0 0.0
    %226 = vmatprep.subr.mxu0 0.0
    %227 = vmatpush1.msra.mxu0 0.0
    %228 = vmatprep.subr.mxu0 0.0
    %229 = vmatpush1.msra.mxu0 0.0
    %230 = vmatprep.subr.mxu0 0.0
    %231 = vmatpush1.msra.mxu0 0.0
    %232 = vmatprep.subr.mxu0 0.0
    %233 = vmatpush1.msra.mxu0 0.0
    %234 = vmatprep.subr.mxu0 0.0
    %235 = vmatpush1.msra.mxu0 0.0
    %236 = vmatprep.subr.mxu0 0.0
    %237 = vmatpush1.msra.mxu0 0.0
    %238 = vmatprep.subr.mxu0 0.0
    %239 = vmatpush1.msra.mxu0 0.0
    %240 = vmatprep.subr.mxu0 0.0
    %241 = vmatpush1.msra.mxu0 0.0
    %242 = vmatprep.subr.mxu0 0.0
    %243 = vmatpush1.msra.mxu0 0.0
    %244 = vmatprep.subr.mxu0 0.0
    %245 = vmatpush1.msra.mxu0 0.0
    %246 = vmatprep.subr.mxu0 0.0
    %247 = vmatpush1.msra.mxu0 0.0
    %248 = vmatprep.subr.mxu0 0.0
    %249 = vmatpush1.msra.mxu0 0.0
    %250 = vmatprep.subr.mxu0 0.0
    %251 = vmatpush1.msra.mxu0 0.0
    %252 = vmatprep.subr.mxu0 0.0
    %253 = vmatpush1.msra.mxu0 0.0
    %254 = vmatprep.subr.mxu0 0.0
    %255 = vmatpush1.msra.mxu0 0.0
    %256 = vmatprep.subr.mxu0 0.0
    %257 = vmatpush1.msra.mxu0 0.0
    %258 = vmatprep.subr.mxu0 0.0
    %259 = vmatpush1.msra.mxu0 0.0
    %260 = vmatprep.subr.mxu0 0.0
    %261 = vmatpush1.msra.mxu0 0.0
    %262 = vmatprep.subr.mxu0 0.0
    %263 = vmatpush1.msra.mxu0 0.0
    %264 = vmatprep.mubr.f32.mxu0 0.0
    %265 = vmatmul.mubr.f32.gmra.mrb[0].mxu0 %v198
    %v266 = vpop.f32.mrb[0].mxu0
    %v267 = vadd.f32 %v194, %v266
    %v268 = vpop.f32.mrb[0].mxu0
    %269 = vdwg.mxu0
    %v270 = vld [vmem:[%s4] sm:$0x1]
    %v271 = vld [vmem:[%s5] sm:$0x1]
    %272 = vadd.xlane.f32.xlu0 %v184
    %v273 = vpop.xlane.xlu0 %272
    %v274 = vmul.f32 %v273, 0.01
    %v275 = vmul.f32 %v184, %v184
    %276 = vadd.xlane.f32.xlu0 %v275
    %v277 = vpop.xlane.xlu0 %276
    %v278 = vmul.f32 %v277, 0.01
    %v279 = vmul.f32 %v274, %v274
    %v280 = vsub.f32 %v278, %v279
    %v281 = vmax.f32 %v280, 0.0
    %v282 = vsub.f32 %v184, %v274
    %v283 = vadd.f32 %v281, 1e-05
    %v284 = vrsqrt.pop %v283
    %v285 = vmul.f32 %v282, %v284
    %v287 = vlaneseq
    %v288 = vshrl.u32 %v287, 7
    %v289 = vsub.s32 0, %v288
    %v290 = vrot.slane %v270, %v289
    %v292 = vmul.f32 %v285, %v290
    %v294 = vlaneseq
    %v295 = vshrl.u32 %v294, 7
    %v296 = vsub.s32 0, %v295
    %v297 = vrot.slane %v271, %v296
    %v299 = vadd.f32 %v292, %v297
    %v300 = vmax.f32 %v299, 0.0
    %v301 = vld [vmem:[#allocation9] sm:$0xff]
    %v302 = vld [vmem:[#allocation9 + $0x8] sm:$0xff]
    %v303 = vld [vmem:[#allocation9 + $0x10] sm:$0xff]
    %v304 = vld [vmem:[#allocation9 + $0x18] sm:$0xff]
    %v305 = vld [vmem:[#allocation9 + $0x20] sm:$0xff]
    %v306 = vld [vmem:[#allocation9 + $0x28] sm:$0xff]
    %v307 = vld [vmem:[#allocation9 + $0x30] sm:$0xff]
    %v308 = vld [vmem:[#allocation9 + $0x38] sm:$0xff]
    %v309 = vld [vmem:[#allocation9 + $0x40] sm:$0xff]
    %v310 = vld [vmem:[#allocation9 + $0x48] sm:$0xff]
    %v311 = vld [vmem:[#allocation9 + $0x50] sm:$0xff]
    %v312 = vld [vmem:[#allocation9 + $0x58] sm:$0xff]
    %v313 = vld [vmem:[#allocation9 + $0x60] sm:$0xff]
    %v314 = vld [vmem:[#allocation9 + $0x68] sm:$0xff]
    %v315 = vld [vmem:[#allocation9 + $0x70] sm:$0xff]
    %v316 = vld [vmem:[#allocation9 + $0x78] sm:$0xff]
    %v317 = vld [vmem:[%s7] sm:$0x1]
    %v319 = vlaneseq
    %v320 = vshrl.u32 %v319, 7
    %v321 = vsub.s32 0, %v320
    %v322 = vrot.slane %v317, %v321
    %324 = vmatprep.subr.mxu0 0.0
    %325 = vmatpush1.msra.mxu0 %v301
    %326 = vmatprep.subr.mxu0 0.0
    %327 = vmatpush1.msra.mxu0 %v302
    %328 = vmatprep.subr.mxu0 0.0
    %329 = vmatpush1.msra.mxu0 %v303
    %330 = vmatprep.subr.mxu0 0.0
    %331 = vmatpush1.msra.mxu0 %v304
    %332 = vmatprep.subr.mxu0 0.0
    %333 = vmatpush1.msra.mxu0 %v305
    %334 = vmatprep.subr.mxu0 0.0
    %335 = vmatpush1.msra.mxu0 %v306
    %336 = vmatprep.subr.mxu0 0.0
    %337 = vmatpush1.msra.mxu0 %v307
    %338 = vmatprep.subr.mxu0 0.0
    %339 = vmatpush1.msra.mxu0 %v308
    %340 = vmatprep.subr.mxu0 0.0
    %341 = vmatpush1.msra.mxu0 %v309
    %342 = vmatprep.subr.mxu0 0.0
    %343 = vmatpush1.msra.mxu0 %v310
    %344 = vmatprep.subr.mxu0 0.0
    %345 = vmatpush1.msra.mxu0 %v311
    %346 = vmatprep.subr.mxu0 0.0
    %347 = vmatpush1.msra.mxu0 %v312
    %348 = vmatprep.subr.mxu0 0.0
    %349 = vmatpush1.msra.mxu0 %v313
    %350 = vmatprep.subr.mxu0 0.0
    %351 = vmatpush1.msra.mxu0 %v314
    %352 = vmatprep.subr.mxu0 0.0
    %353 = vmatpush1.msra.mxu0 %v315
    %354 = vmatprep.subr.mxu0 0.0
    %355 = vmatpush1.msra.mxu0 %v316
    %356 = vmatprep.subr.mxu0 0.0
    %357 = vmatpush1.msra.mxu0 0.0
    %358 = vmatprep.subr.mxu0 0.0
    %359 = vmatpush1.msra.mxu0 0.0
    %360 = vmatprep.subr.mxu0 0.0
    %361 = vmatpush1.msra.mxu0 0.0
    %362 = vmatprep.subr.mxu0 0.0
    %363 = vmatpush1.msra.mxu0 0.0
    %364 = vmatprep.subr.mxu0 0.0
    %365 = vmatpush1.msra.mxu0 0.0
    %366 = vmatprep.subr.mxu0 0.0
    %367 = vmatpush1.msra.mxu0 0.0
    %368 = vmatprep.subr.mxu0 0.0
    %369 = vmatpush1.msra.mxu0 0.0
    %370 = vmatprep.subr.mxu0 0.0
    %371 = vmatpush1.msra.mxu0 0.0
    %372 = vmatprep.subr.mxu0 0.0
    %373 = vmatpush1.msra.mxu0 0.0
    %374 = vmatprep.subr.mxu0 0.0
    %375 = vmatpush1.msra.mxu0 0.0
    %376 = vmatprep.subr.mxu0 0.0
    %377 = vmatpush1.msra.mxu0 0.0
    %378 = vmatprep.subr.mxu0 0.0
    %379 = vmatpush1.msra.mxu0 0.0
    %380 = vmatprep.subr.mxu0 0.0
    %381 = vmatpush1.msra.mxu0 0.0
    %382 = vmatprep.subr.mxu0 0.0
    %383 = vmatpush1.msra.mxu0 0.0
    %384 = vmatprep.subr.mxu0 0.0
    %385 = vmatpush1.msra.mxu0 0.0
    %386 = vmatprep.subr.mxu0 0.0
    %387 = vmatpush1.msra.mxu0 0.0
    %388 = vmatprep.mubr.f32.mxu0 0.0
    %389 = vmatmul.mubr.f32.gmra.mrb[0].mxu0 %v300
    %v390 = vpop.f32.mrb[0].mxu0
    %v391 = vadd.f32 %v322, %v390
    %v392 = vpop.f32.mrb[0].mxu0
    %393 = vdwg.mxu0
    %v394 = vld [vmem:[%s8] sm:$0x1]
    %v395 = vld [vmem:[%s9] sm:$0x1]
    %396 = vadd.xlane.f32.xlu0 %v391
    %v397 = vpop.xlane.xlu0 %396
    %v398 = vmul.f32 %v397, 0.016666668
    %v399 = vmul.f32 %v391, %v391
    %400 = vadd.xlane.f32.xlu0 %v399
    %v401 = vpop.xlane.xlu0 %400
    %v402 = vmul.f32 %v401, 0.016666668
    %v403 = vmul.f32 %v398, %v398
    %v404 = vsub.f32 %v402, %v403
    %v405 = vmax.f32 %v404, 0.0
    %v406 = vsub.f32 %v391, %v398
    %v407 = vadd.f32 %v405, 1e-05
    %v408 = vrsqrt.pop %v407
    %v409 = vmul.f32 %v406, %v408
    %v411 = vlaneseq
    %v412 = vshrl.u32 %v411, 7
    %v413 = vsub.s32 0, %v412
    %v414 = vrot.slane %v394, %v413
    %v416 = vmul.f32 %v409, %v414
    %v418 = vlaneseq
    %v419 = vshrl.u32 %v418, 7
    %v420 = vsub.s32 0, %v419
    %v421 = vrot.slane %v395, %v420
    %v423 = vadd.f32 %v416, %v421
    %v424 = vmax.f32 %v423, 0.0
    %v425 = vadd.f32 %v424, %v267
    %v426 = vmax.f32 %v425, 0.0
    %v427 = vld [vmem:[%s12] sm:$0x1]
    %v429 = vlaneseq
    %v430 = vshrl.u32 %v429, 7
    %v431 = vsub.s32 0, %v430
    %v432 = vrot.slane %v427, %v431
    %v434 = vmul.f32 %v426, %v432
    %435 = vadd.xlane.f32.xlu0 %v434
    %v436 = vpop.xlane.xlu0 %435
    %v437 = vld [vmem:[#allocation2] sm:$0x1]
    %v439 = vlaneseq
    %v440 = vshrl.u32 %v439, 7
    %v441 = vsub.s32 0, %v440
    %v442 = vrot.slane %v437, %v441
    %v444 = vadd.f32 %v436, %v442
    %446 = vset.pattern.permute.xlu0 0
    %447 = vperm.xlu0 %446, %v444
    %v448 = vpop.permute.xlu0 %447
    %v449 = vlaneseq
    %v450 = vand.u32 %v449, 127
    %v451 = vlaneseq
    %v452 = vshrl.u32 %v451, 7
    %v453 = vsub.s32 %v450, %v452
    %v454 = vrot.slane %v448, %v453
    %vm456 = vcmask 57344
    %457 = vst.msk [vmem:[#allocation11] sm:$0x1] %vm456, %v454
    // Predicated region
    $region74: #{tpu_custom_call.1} parent=1 // pred_check
      _
    $region75: #{tpu_custom_call.1} parent=1 // pred_check_branch
      %459 = sbr.rel (0) target = $region77
    $region76: #{tpu_custom_call.1} parent=1 // pred_region
      %s461 = ssub.s32 16, 16
      %462 = vsyncadd [#allocation5], %s461
      %s464 = sshll.u32 [#allocation11], 4
      %s465 = int_to_ptr.vmem [resolvable:$true] %s464
      %467 = dma.vmem_to_hbm [thread:$0]  %s465, 16, %s14, [#allocation5]
    $region77: #{tpu_custom_call.1} parent=1 // pred_fallthru
      _
    // Predicated region
    $region78: #{tpu_custom_call.1} parent=1 // pred_check
      _
    $region79: #{tpu_custom_call.1} parent=1 // pred_check_branch
      %469 = sbr.rel (0) target = $region81
    $region80: #{tpu_custom_call.1} parent=1 // pred_region
      %470 = dma.done [#allocation5], 16
    $region81: #{tpu_custom_call.1} parent=1 // pred_fallthru
      _
    %471 = vsyncpa [#allocation4], 1
    %472 = vsyncpa [#allocation7], 1
    %473 = vsyncpa [#allocation10], 1
    %474 = vsyncpa [#allocation5], 1

</llo_original>
